<compile_context>
chip_gen: v6e
topology: v6e:2x2x1
jax: 0.10.0
libtpu: 0.0.40
codegen_flags: <defaults>
</compile_context>

<pallas_src>
import math
import jax
import jax.numpy as jnp
from jax.experimental import pallas as pl
from jax.experimental.pallas import tpu as pltpu

IN_FEATURES = 43
OUT_FEATURES = 1

# Batch-tile size. Multiple of 8 (sublane). 8192 rows => ~16 MiB of VMEM
# (input + lane-padded output, double-buffered), under the explicit 32 MiB limit.
DEFAULT_BLOCK_ROWS = 8192
VMEM_LIMIT_BYTES = 32 * 1024 * 1024


def linear_kernel(x_ref, w_ref, b_ref, o_ref):
    # x_ref: [TB, 43] VMEM tile of the batch (streamed / double-buffered)
    # w_ref: [43, 1]  VMEM-resident weight column (same block every grid step)
    # b_ref: [1]      SMEM scalar bias (f32)
    # o_ref: [TB, 1]  output tile
    x = x_ref[...]                                   # [TB, 43]
    w = w_ref[...]                                   # [43, 1]
    # MXU matvec with f32 accumulation; no XLU lane-reduce on the path.
    y = jnp.dot(x, w, preferred_element_type=jnp.float32)   # [TB, 1] f32
    o_ref[...] = (y + b_ref[0]).astype(o_ref.dtype)


def linear_forward(x, weight, bias, *, block_rows=DEFAULT_BLOCK_ROWS):
    """y = x @ weight.T + bias  (weight: [out, in] PyTorch convention, out=1)."""
    batch, k = x.shape
    assert k == IN_FEATURES and weight.shape == (OUT_FEATURES, IN_FEATURES)

    # Tile size: multiple of 8 (sublane), capped by the (8-rounded) batch.
    tb = min(block_rows, 8 * pl.cdiv(batch, 8))
    tb = max(8, (tb // 8) * 8)
    num_tiles = pl.cdiv(batch, tb)
    batch_pad = num_tiles * tb

    if batch_pad != batch:
        # Ragged last tile: pad with zeros, slice the result afterwards.
        x = jnp.pad(x, ((0, batch_pad - batch), (0, 0)))

    # Weight as a [43, 1] column so the kernel is a plain MXU matmul.
    # (out_features == 1, so reshape == transpose.)  Match the input dtype so
    # bf16 inputs take the native bf16 MXU path with f32 accumulation.
    w_col = weight.reshape(IN_FEATURES, OUT_FEATURES).astype(x.dtype)
    b_vec = bias.reshape(OUT_FEATURES).astype(jnp.float32)   # (1,) scalar in SMEM

    out = pl.pallas_call(
        linear_kernel,
        out_shape=jax.ShapeDtypeStruct((batch_pad, OUT_FEATURES), x.dtype),
        grid_spec=pltpu.PrefetchScalarGridSpec(
            num_scalar_prefetch=0,
            grid=(num_tiles,),
            in_specs=[
                # Streamed batch tiles (double-buffered by the Pallas pipeline).
                pl.BlockSpec((tb, IN_FEATURES), lambda i: (i, 0)),
                # Weight column: same block every step -> stays VMEM-resident.
                pl.BlockSpec((IN_FEATURES, OUT_FEATURES), lambda i: (0, 0)),
                # Bias: single scalar, keep it in SMEM.
                pl.BlockSpec(memory_space=pltpu.MemorySpace.SMEM),
            ],
            out_specs=pl.BlockSpec((tb, OUT_FEATURES), lambda i: (i, 0)),
        ),
        compiler_params=pltpu.CompilerParams(
            dimension_semantics=("parallel",),     # shard batch tiles across TCs (v7x)
            vmem_limit_bytes=VMEM_LIMIT_BYTES,     # ~16 MiB needed at TB=8192
        ),
    )(x, w_col, b_vec)

    return out[:batch]


def init_params(key):
    # Deterministic init mimicking nn.Linear's default: U(-1/sqrt(in), 1/sqrt(in)).
    kw, kb = jax.random.split(key)
    bound = 1.0 / math.sqrt(IN_FEATURES)
    weight = jax.random.uniform(
        kw, (OUT_FEATURES, IN_FEATURES), jnp.float32, minval=-bound, maxval=bound)
    bias = jax.random.uniform(
        kb, (OUT_FEATURES,), jnp.float32, minval=-bound, maxval=bound)
    return weight, bias


if __name__ == "__main__":
    key = jax.random.PRNGKey(0)
    kx, kp, kx2 = jax.random.split(key, 3)

    weight, bias = init_params(kp)

    # Small single-tile smoke test (matches the module's forward: [B, 43] -> [B, 1]).
    batch = 8
    x = jax.random.normal(kx, (batch, IN_FEATURES), jnp.float32)
    out = linear_forward(x, weight, bias)
    jax.block_until_ready(out)
    ref = x @ weight.T + bias
    assert out.shape == (batch, OUT_FEATURES)
    assert jnp.allclose(out, ref, atol=1e-5, rtol=1e-5)

    # Multi-tile path with a ragged tail (300 rows, TB=64 -> grid of 5, pad to 320).
    batch2 = 300
    x2 = jax.random.normal(kx2, (batch2, IN_FEATURES), jnp.float32)
    out2 = linear_forward(x2, weight, bias, block_rows=64)
    jax.block_until_ready(out2)
    ref2 = x2 @ weight.T + bias
    assert out2.shape == (batch2, OUT_FEATURES)
    assert jnp.allclose(out2, ref2, atol=1e-5, rtol=1e-5)

    print("KERNEL_OK")
</pallas_src>

<mosaic_0001>
module attributes {stable_mosaic.version = 11 : i64} {
  func.func @linear_kernel(%arg0: i32, %arg1: memref<8x43xf32, #tpu.memory_space<vmem>>, %arg2: memref<43x1xf32, #tpu.memory_space<vmem>>, %arg3: memref<1xf32, #tpu.memory_space<smem>>, %arg4: memref<8x1xf32, #tpu.memory_space<vmem>>) attributes {dimension_semantics = [#tpu.dimension_semantics<parallel>], iteration_bounds = array<i64: 1>, scalar_prefetch = 0 : i64, scratch_operands = 0 : i64, tpu.core_type = #tpu.core_type<tc>, window_params = [{transform_indices = @transform_0, window_bounds = array<i64: 8, 43>}, {pipeline_mode = #tpu.pipeline_mode<synchronous>, transform_indices = @transform_1, window_bounds = array<i64: 43, 1>}, {transform_indices = @transform_2, window_bounds = array<i64: 1>}, {transform_indices = @transform_3, window_bounds = array<i64: 8, 1>}]} {
    %c0 = arith.constant 0 : index
    %c0_0 = arith.constant 0 : index
    %0 = vector.load %arg1[%c0, %c0_0] : memref<8x43xf32, #tpu.memory_space<vmem>>, vector<8x43xf32>
    %c0_1 = arith.constant 0 : index
    %c0_2 = arith.constant 0 : index
    %1 = vector.load %arg2[%c0_1, %c0_2] : memref<43x1xf32, #tpu.memory_space<vmem>>, vector<43x1xf32>
    %cst = arith.constant dense<0.000000e+00> : vector<8x1xf32>
    %2 = tpu.matmul %0, %1, %cst {dimension_numbers = #tpu.dot_dimension_numbers<[1], [0], [0], [1], [0, 0, 1, 1], [], []>} : vector<8x43xf32>, vector<43x1xf32>, vector<8x1xf32> -> vector<8x1xf32>
    %c0_3 = arith.constant 0 : index
    %3 = memref.load %arg3[%c0_3] : memref<1xf32, #tpu.memory_space<smem>>
    %4 = vector.broadcast %3 : f32 to vector<8x1xf32>
    %5 = arith.addf %2, %4 : vector<8x1xf32>
    %c0_4 = arith.constant 0 : index
    %c0_5 = arith.constant 0 : index
    %6 = vector.load %arg4[%c0_4, %c0_5] : memref<8x1xf32, #tpu.memory_space<vmem>>, vector<8x1xf32>
    tpu.vector_store %arg4[%c0_4, %c0_5], %5 {strides = array<i32>} : memref<8x1xf32, #tpu.memory_space<vmem>>, vector<8x1xf32>,
    return
  }
  func.func @transform_0(%arg0: i32) -> (i32, i32) {
    %c0_i32 = arith.constant 0 : i32
    %c0_i32_0 = arith.constant 0 : i32
    return %arg0, %c0_i32 : i32, i32
  }
  func.func @transform_1(%arg0: i32) -> (i32, i32) {
    %c0_i32 = arith.constant 0 : i32
    %c0_i32_0 = arith.constant 0 : i32
    %c0_i32_1 = arith.constant 0 : i32
    return %c0_i32, %c0_i32_0 : i32, i32
  }
  func.func @transform_2(%arg0: i32) -> i32 {
    %c0_i32 = arith.constant 0 : i32
    %c0_i32_0 = arith.constant 0 : i32
    return %c0_i32 : i32
  }
  func.func @transform_3(%arg0: i32) -> (i32, i32) {
    %c0_i32 = arith.constant 0 : i32
    %c0_i32_0 = arith.constant 0 : i32
    return %arg0, %c0_i32 : i32, i32
  }
}

</mosaic_0001>

<llo_original>
// kernel: tpu_custom_call.1
$region0: #{tpu_custom_call.1}
  #allocation0 [shape = 'u32[]', space=smem, size = 0x4, offset = 0x4, fixed_abs, tag = 'smem constant byte address 0x4 - core index']
  #allocation1 [shape = 'u32[144,128]{1,0:T(1,128)}', space=vmem, size = 0x12000, scoped, tag = 'internal scratch']
  #allocation2 [shape = 'f32[1]{0:T(128)S(6)}', space=smem, size = 0x200, scoped, tag = 'scoped memory for tpu_custom_call.1']
  %s0 = inlined_call_operand.vmem [shape: f32[8,43], index: 0, kind: input, shape index: {}]
  %s1 = inlined_call_operand.vmem [shape: f32[43,1], index: 1, kind: input, shape index: {}]
  %s2 = inlined_call_operand.<no memory space> [shape: f32[1], index: 2, kind: input, shape index: {}]
  %s3 = inlined_call_operand.vmem [shape: f32[8,1], index: 3, kind: output, shape index: {}]
  %s4 = sld [smem:[#allocation0]]
  $region22: #{tpu_custom_call.1} parent=0
    _
  %s6 = ssub.s32 1, %s4
  %s7 = scalar_select 0, %s6, %s4
  %8 = sst [smem:[#allocation2]] %s2
  // Predicated region
  $region2: #{tpu_custom_call.1} parent=0 // pred_check
    _
  $region3: #{tpu_custom_call.1} parent=0 // pred_check_branch
    %10 = sbr.rel (0) target = $region5
  $region4: #{tpu_custom_call.1} parent=0 // pred_region
    _
  $region5: #{tpu_custom_call.1} parent=0 // pred_fallthru
    _
  // Predicated region
  $region6: #{tpu_custom_call.1} parent=0 // pred_check
    _
  $region7: #{tpu_custom_call.1} parent=0 // pred_check_branch
    %12 = sbr.rel (0) target = $region9
  $region8: #{tpu_custom_call.1} parent=0 // pred_region
    _
  $region9: #{tpu_custom_call.1} parent=0 // pred_fallthru
    _
  // Predicated region
  $region10: #{tpu_custom_call.1} parent=0 // pred_check
    _
  $region11: #{tpu_custom_call.1} parent=0 // pred_check_branch
    %14 = sbr.rel (0) target = $region13
  $region12: #{tpu_custom_call.1} parent=0 // pred_region
    _
  $region13: #{tpu_custom_call.1} parent=0 // pred_fallthru
    _
  %v15 = vld [vmem:[%s0] sm:$0xff]
  %v16 = vld [vmem:[%s1] sm:$0xff]
  %v17 = vld [vmem:[%s1 + $0x8] sm:$0xff]
  %v18 = vld [vmem:[%s1 + $0x10] sm:$0xff]
  %v19 = vld [vmem:[%s1 + $0x18] sm:$0xff]
  %v20 = vld [vmem:[%s1 + $0x20] sm:$0xff]
  %v21 = vld [vmem:[%s1 + $0x28] sm:$0x7]
  %s22 = sld [smem:[#allocation2]]
  %v23 = vstv %s22
  %vm24 = vcmask 351232
  %v26 = vsel %vm24, %v15, 0
  %vm28 = vcmask 1042432
  %v30 = vsel %vm28, %v21, 0
  %32 = vmatprep.subr.mxu0 0.0
  %33 = vmatpush1.msra.mxu0 0.0
  %34 = vmatprep.subr.mxu0 0.0
  %35 = vmatpush1.msra.mxu0 0.0
  %36 = vmatprep.subr.mxu0 0.0
  %37 = vmatpush1.msra.mxu0 0.0
  %38 = vmatprep.subr.mxu0 0.0
  %39 = vmatpush1.msra.mxu0 0.0
  %40 = vmatprep.subr.mxu0 0.0
  %41 = vmatpush1.msra.mxu0 0.0
  %42 = vmatprep.subr.mxu0 0.0
  %43 = vmatpush1.msra.mxu0 0.0
  %44 = vmatprep.subr.mxu0 0.0
  %45 = vmatpush1.msra.mxu0 0.0
  %46 = vmatprep.subr.mxu0 0.0
  %47 = vmatpush1.msra.mxu0 0.0
  %48 = vmatprep.subr.mxu0 0.0
  %49 = vmatpush1.msra.mxu0 0.0
  %50 = vmatprep.subr.mxu0 0.0
  %51 = vmatpush1.msra.mxu0 0.0
  %52 = vmatprep.subr.mxu0 0.0
  %53 = vmatpush1.msra.mxu0 %v30
  %54 = vmatprep.subr.mxu0 0.0
  %55 = vmatpush1.msra.mxu0 %v20
  %56 = vmatprep.subr.mxu0 0.0
  %57 = vmatpush1.msra.mxu0 %v19
  %58 = vmatprep.subr.mxu0 0.0
  %59 = vmatpush1.msra.mxu0 %v18
  %60 = vmatprep.subr.mxu0 0.0
  %61 = vmatpush1.msra.mxu0 %v17
  %62 = vmatprep.subr.mxu0 0.0
  %63 = vmatpush1.msra.mxu0 %v16
  %64 = vmatprep.subr.mxu0 0.0
  %65 = vmatpush2.msra.mxu0 0.0
  %66 = vmatprep.subr.mxu0 0.0
  %67 = vmatpush2.msra.mxu0 0.0
  %68 = vmatprep.subr.mxu0 0.0
  %69 = vmatpush2.msra.mxu0 0.0
  %70 = vmatprep.subr.mxu0 0.0
  %71 = vmatpush2.msra.mxu0 0.0
  %72 = vmatprep.subr.mxu0 0.0
  %73 = vmatpush2.msra.mxu0 0.0
  %74 = vmatprep.subr.mxu0 0.0
  %75 = vmatpush2.msra.mxu0 0.0
  %76 = vmatprep.subr.mxu0 0.0
  %77 = vmatpush2.msra.mxu0 0.0
  %78 = vmatprep.subr.mxu0 0.0
  %79 = vmatpush2.msra.mxu0 0.0
  %80 = vmatprep.subr.mxu0 0.0
  %81 = vmatpush2.msra.mxu0 0.0
  %82 = vmatprep.subr.mxu0 0.0
  %83 = vmatpush2.msra.mxu0 0.0
  %84 = vmatprep.subr.mxu0 0.0
  %85 = vmatpush2.msra.mxu0 0.0
  %86 = vmatprep.subr.mxu0 0.0
  %87 = vmatpush2.msra.mxu0 0.0
  %88 = vmatprep.subr.mxu0 0.0
  %89 = vmatpush2.msra.mxu0 0.0
  %90 = vmatprep.subr.mxu0 0.0
  %91 = vmatpush2.msra.mxu0 0.0
  %92 = vmatprep.subr.mxu0 0.0
  %93 = vmatpush2.msra.mxu0 0.0
  %94 = vmatprep.subr.mxu0 0.0
  %95 = vmatpush2.msra.mxu0 0.0
  %96 = vmatprep.mubr.f32.mxu0 0.0
  %97 = vmatmul.mubr.f32.gmra.mxu0 %v26
  %v98 = vpop.f32.mrf.mxu0
  %v99 = vadd.f32 %v23, %v98
  %v100 = vpop.f32.mrf.mxu0
  %101 = vdwg.mxu0
  %vm102 = vcmask 7168
  %103 = vst.msk [vmem:[%s3] sm:$0xff] %vm102, %v99
  // Predicated region
  $region14: #{tpu_custom_call.1} parent=0 // pred_check
    _
  $region15: #{tpu_custom_call.1} parent=0 // pred_check_branch
    %105 = sbr.rel (0) target = $region17
  $region16: #{tpu_custom_call.1} parent=0 // pred_region
    _
  $region17: #{tpu_custom_call.1} parent=0 // pred_fallthru
    _
  // Predicated region
  $region18: #{tpu_custom_call.1} parent=0 // pred_check
    _
  $region19: #{tpu_custom_call.1} parent=0 // pred_check_branch
    %107 = sbr.rel (0) target = $region21
  $region20: #{tpu_custom_call.1} parent=0 // pred_region
    _
  $region21: #{tpu_custom_call.1} parent=0 // pred_fallthru
    _

</llo_original>
